<compile_context>
chip_gen: v6e
topology: v6e:2x2x1
jax: 0.10.0
libtpu: 0.0.40
codegen_flags: <defaults>
</compile_context>

<pallas_src>
import math

import jax
import jax.numpy as jnp
from jax.experimental import pallas as pl
from jax.experimental.pallas import tpu as pltpu


def _round_up(x: int, m: int) -> int:
    return ((x + m - 1) // m) * m


def _cdiv(a: int, b: int) -> int:
    return -(-a // b)


def _resize_kernel(x_ref, ah_ref, awt_ref, o_ref):
    # x_ref  : (C, H_in, W_in)       bf16, whole image, resident across the grid
    # ah_ref : (TH, H_in)            bf16, current row-tile of the height interp matrix
    # awt_ref: (W_in, W_out_pad)     bf16, pre-transposed width interp matrix, resident
    # o_ref  : (C, TH, W_out_pad)    f32 output row-tile (all channels)
    C = x_ref.shape[0]
    ah = ah_ref[...]
    awt = awt_ref[...]
    # C is small and static -> unrolled loop; each iteration is two plain MXU matmuls
    # with no transposes and f32 accumulation.
    for c in range(C):
        tmp = jnp.dot(ah, x_ref[c], preferred_element_type=jnp.float32)      # (TH, W_in)
        o_ref[c] = jnp.dot(tmp.astype(jnp.bfloat16), awt,
                           preferred_element_type=jnp.float32)               # (TH, W_out_pad)


def _interp_matrix(out_size: int, in_size: int, scale: float) -> jnp.ndarray:
    """Dense 1-D bilinear interpolation matrix matching PyTorch
    F.interpolate(mode='bilinear', align_corners=False) with an explicit
    scale_factor (recompute_scale_factor=None semantics). Shape (out_size, in_size)."""
    dst = jnp.arange(out_size, dtype=jnp.float32)
    src = jnp.maximum((dst + 0.5) / scale - 0.5, 0.0)
    i0 = jnp.floor(src).astype(jnp.int32)
    i0 = jnp.minimum(i0, in_size - 1)
    i1 = jnp.where(i0 < in_size - 1, i0 + 1, i0)
    frac = jnp.clip(src - i0.astype(jnp.float32), 0.0, 1.0)
    cols = jnp.arange(in_size, dtype=jnp.int32)[None, :]
    w0 = (1.0 - frac)[:, None] * (cols == i0[:, None]).astype(jnp.float32)
    w1 = frac[:, None] * (cols == i1[:, None]).astype(jnp.float32)
    return w0 + w1


def bilinear_resize_chw(image_chw: jnp.ndarray, scale: float) -> jnp.ndarray:
    """Bilinear resize (align_corners=False) of a CHW image by `scale`."""
    C, H_in, W_in = image_chw.shape
    H_out = int(math.floor(H_in * scale))
    W_out = int(math.floor(W_in * scale))

    # ---- padded / tiled output geometry (lane-dense, sublane-aligned) -----------
    W_out_pad = _round_up(W_out, 128)          # lane-dense output stores
    MAX_TH = 256                               # row-tile cap for large images
    H_out_8 = _round_up(H_out, 8)
    if H_out_8 <= 16:
        # tiny output: one grid step, no pipelining overhead
        th = H_out_8
    else:
        # >= 2 row-tiles so the "parallel" axis balances the 2 TensorCores on v7x,
        # each tile a multiple of 8 sublanes and bounded by MAX_TH
        n_tiles = max(2, _cdiv(H_out_8, MAX_TH))
        th = _round_up(_cdiv(H_out_8, n_tiles), 8)
    H_out_pad = _round_up(H_out_8, th)
    num_h_tiles = H_out_pad // th

    # ---- separable interpolation matrices (padded, bf16, A_w pre-transposed) ----
    a_h = _interp_matrix(H_out, H_in, scale)                                      # (H_out, H_in)
    a_h = jnp.pad(a_h, ((0, H_out_pad - H_out), (0, 0))).astype(jnp.bfloat16)     # (H_out_pad, H_in)
    a_w = _interp_matrix(W_out, W_in, scale)                                      # (W_out, W_in)
    a_wt = jnp.pad(a_w, ((0, W_out_pad - W_out), (0, 0))).T.astype(jnp.bfloat16)  # (W_in, W_out_pad)

    x_bf16 = image_chw.astype(jnp.bfloat16)

    # Advisory cost hint for XLA's scheduler around the custom call.
    flops = 2 * C * (H_out_pad * H_in * W_in + H_out_pad * W_in * W_out_pad)
    bytes_accessed = (x_bf16.size + a_h.size + a_wt.size) * 2 \
        + C * H_out_pad * W_out_pad * 4
    cost = pl.CostEstimate(flops=flops, transcendentals=0,
                           bytes_accessed=bytes_accessed)

    out_pad = pl.pallas_call(
        _resize_kernel,
        out_shape=jax.ShapeDtypeStruct((C, H_out_pad, W_out_pad), jnp.float32),
        grid=(num_h_tiles,),
        in_specs=[
            pl.BlockSpec((C, H_in, W_in), lambda i: (0, 0, 0)),      # image: resident
            pl.BlockSpec((th, H_in), lambda i: (i, 0)),              # A_h row tile
            pl.BlockSpec((W_in, W_out_pad), lambda i: (0, 0)),       # A_w^T: resident
        ],
        out_specs=pl.BlockSpec((C, th, W_out_pad), lambda i: (0, i, 0)),
        compiler_params=pltpu.CompilerParams(
            dimension_semantics=("parallel",),
            vmem_limit_bytes=48 * 1024 * 1024,   # headroom under v7x's 64 MiB physical VMEM
        ),
        cost_estimate=cost,
    )(x_bf16, a_h, a_wt)

    return out_pad[:, :H_out, :W_out]


def _reference_resize(image_chw: jnp.ndarray, scale: float) -> jnp.ndarray:
    """Pure-JAX f32 reference (same interpolation math) for tolerance checking."""
    _, H_in, W_in = image_chw.shape
    H_out = int(math.floor(H_in * scale))
    W_out = int(math.floor(W_in * scale))
    a_h = _interp_matrix(H_out, H_in, scale)
    a_w = _interp_matrix(W_out, W_in, scale)
    return jnp.einsum("oh,chw,pw->cop", a_h, image_chw.astype(jnp.float32), a_w)


class DefaultPredictorPallas:
    """JAX/Pallas re-implementation of DefaultPredictor.forward preprocessing."""

    def __init__(self, min_size_test: int = 12, max_size_test: int = 20,
                 input_format: str = "RGB"):
        assert input_format in ("RGB", "BGR"), input_format
        self.min_size = min_size_test
        self.max_size = max_size_test
        self.input_format = input_format
        # TODO(synk): build_model(cfg) + DetectionCheckpointer weight loading (the
        # downstream detection-model call self.model([inputs])) have no self-contained
        # Pallas equivalent; only the forward's preprocessing compute is kernelized.

    def __call__(self, original_image: jnp.ndarray, bgr: bool = True):
        # accept HWC or CHW, exactly like the PyTorch module
        if original_image.shape[2] == 3:
            image = jnp.transpose(original_image, (2, 0, 1))
        else:
            assert original_image.shape[0] == 3, (
                "Only 3 channels expected either in HWC or CHW format, got {}".format(
                    original_image.shape))
            image = original_image
        if self.input_format == "RGB" and bgr:
            image = jnp.flip(image, axis=0)  # channel flip (BGR -> RGB)

        height = image.shape[1]
        width = image.shape[2]
        k = min(self.min_size / min(height, width),
                self.max_size / max(height, width))

        resized = bilinear_resize_chw(image, k)
        return {
            "image": resized,
            # int32 instead of torch's int64 to avoid requiring jax x64 mode
            "height": jnp.asarray(height, dtype=jnp.int32),
            "width": jnp.asarray(width, dtype=jnp.int32),
        }


if __name__ == "__main__":
    key = jax.random.PRNGKey(0)
    # small synthetic HWC "BGR image": H=16, W=24, C=3
    original_image = jax.random.uniform(
        key, (16, 24, 3), dtype=jnp.float32, minval=0.0, maxval=255.0)

    predictor = DefaultPredictorPallas(min_size_test=12, max_size_test=20,
                                       input_format="RGB")
    out = predictor(original_image, bgr=True)
    jax.block_until_ready(out["image"])

    # shape sanity: k = min(12/16, 20/24) = 0.75 -> (3, 12, 18)
    assert out["image"].shape == (3, 12, 18), out["image"].shape

    # numeric sanity against a pure-JAX f32 reference (bf16 operands => loose tol
    # appropriate for 8-bit image data)
    image_chw = jnp.flip(jnp.transpose(original_image, (2, 0, 1)), axis=0)
    ref = _reference_resize(image_chw, 0.75)
    assert jnp.allclose(out["image"], ref, atol=5.0, rtol=0.05), (
        float(jnp.max(jnp.abs(out["image"] - ref))))

    print("KERNEL_OK")
</pallas_src>

<mosaic_0001>
module attributes {stable_mosaic.version = 11 : i64} {
  func.func @_resize_kernel(%arg0: i32, %arg1: memref<3x16x24xbf16, #tpu.memory_space<vmem>>, %arg2: memref<16x16xbf16, #tpu.memory_space<vmem>>, %arg3: memref<24x128xbf16, #tpu.memory_space<vmem>>, %arg4: memref<3x16x128xf32, #tpu.memory_space<vmem>>) attributes {dimension_semantics = [#tpu.dimension_semantics<parallel>], iteration_bounds = array<i64: 1>, scalar_prefetch = 0 : i64, scratch_operands = 0 : i64, tpu.core_type = #tpu.core_type<tc>, window_params = [{pipeline_mode = #tpu.pipeline_mode<synchronous>, transform_indices = @transform_0, window_bounds = array<i64: 3, 16, 24>}, {transform_indices = @transform_1, window_bounds = array<i64: 16, 16>}, {pipeline_mode = #tpu.pipeline_mode<synchronous>, transform_indices = @transform_2, window_bounds = array<i64: 24, 128>}, {transform_indices = @transform_3, window_bounds = array<i64: 3, 16, 128>}]} {
    %c0 = arith.constant 0 : index
    %c0_0 = arith.constant 0 : index
    %0 = vector.load %arg2[%c0, %c0_0] : memref<16x16xbf16, #tpu.memory_space<vmem>>, vector<16x16xbf16>
    %c0_1 = arith.constant 0 : index
    %c0_2 = arith.constant 0 : index
    %1 = vector.load %arg3[%c0_1, %c0_2] : memref<24x128xbf16, #tpu.memory_space<vmem>>, vector<24x128xbf16>
    %c0_3 = arith.constant 0 : index
    %c0_4 = arith.constant 0 : index
    %c0_5 = arith.constant 0 : index
    %2 = vector.load %arg1[%c0_3, %c0_4, %c0_5] : memref<3x16x24xbf16, #tpu.memory_space<vmem>>, vector<1x16x24xbf16>
    %3 = vector.shape_cast %2 : vector<1x16x24xbf16> to vector<16x24xbf16>
    %cst = arith.constant dense<0.000000e+00> : vector<16x24xf32>
    %4 = tpu.matmul %0, %3, %cst {dimension_numbers = #tpu.dot_dimension_numbers<[1], [0], [0], [1], [0, 0, 1, 1], [], []>} : vector<16x16xbf16>, vector<16x24xbf16>, vector<16x24xf32> -> vector<16x24xf32>
    %5 = arith.truncf %4 : vector<16x24xf32> to vector<16x24xbf16>
    %cst_6 = arith.constant dense<0.000000e+00> : vector<16x128xf32>
    %6 = tpu.matmul %5, %1, %cst_6 {dimension_numbers = #tpu.dot_dimension_numbers<[1], [0], [0], [1], [0, 0, 1, 1], [], []>} : vector<16x24xbf16>, vector<24x128xbf16>, vector<16x128xf32> -> vector<16x128xf32>
    %c0_7 = arith.constant 0 : index
    %c0_8 = arith.constant 0 : index
    %c0_9 = arith.constant 0 : index
    %7 = vector.load %arg4[%c0_7, %c0_8, %c0_9] : memref<3x16x128xf32, #tpu.memory_space<vmem>>, vector<1x16x128xf32>
    %8 = vector.shape_cast %7 : vector<1x16x128xf32> to vector<16x128xf32>
    %9 = vector.shape_cast %6 : vector<16x128xf32> to vector<1x16x128xf32>
    tpu.vector_store %arg4[%c0_7, %c0_8, %c0_9], %9 {strides = array<i32>} : memref<3x16x128xf32, #tpu.memory_space<vmem>>, vector<1x16x128xf32>,
    %c1 = arith.constant 1 : index
    %c0_10 = arith.constant 0 : index
    %c0_11 = arith.constant 0 : index
    %10 = vector.load %arg1[%c1, %c0_10, %c0_11] : memref<3x16x24xbf16, #tpu.memory_space<vmem>>, vector<1x16x24xbf16>
    %11 = vector.shape_cast %10 : vector<1x16x24xbf16> to vector<16x24xbf16>
    %cst_12 = arith.constant dense<0.000000e+00> : vector<16x24xf32>
    %12 = tpu.matmul %0, %11, %cst_12 {dimension_numbers = #tpu.dot_dimension_numbers<[1], [0], [0], [1], [0, 0, 1, 1], [], []>} : vector<16x16xbf16>, vector<16x24xbf16>, vector<16x24xf32> -> vector<16x24xf32>
    %13 = arith.truncf %12 : vector<16x24xf32> to vector<16x24xbf16>
    %cst_13 = arith.constant dense<0.000000e+00> : vector<16x128xf32>
    %14 = tpu.matmul %13, %1, %cst_13 {dimension_numbers = #tpu.dot_dimension_numbers<[1], [0], [0], [1], [0, 0, 1, 1], [], []>} : vector<16x24xbf16>, vector<24x128xbf16>, vector<16x128xf32> -> vector<16x128xf32>
    %c1_14 = arith.constant 1 : index
    %c0_15 = arith.constant 0 : index
    %c0_16 = arith.constant 0 : index
    %15 = vector.load %arg4[%c1_14, %c0_15, %c0_16] : memref<3x16x128xf32, #tpu.memory_space<vmem>>, vector<1x16x128xf32>
    %16 = vector.shape_cast %15 : vector<1x16x128xf32> to vector<16x128xf32>
    %17 = vector.shape_cast %14 : vector<16x128xf32> to vector<1x16x128xf32>
    tpu.vector_store %arg4[%c1_14, %c0_15, %c0_16], %17 {strides = array<i32>} : memref<3x16x128xf32, #tpu.memory_space<vmem>>, vector<1x16x128xf32>,
    %c2 = arith.constant 2 : index
    %c0_17 = arith.constant 0 : index
    %c0_18 = arith.constant 0 : index
    %18 = vector.load %arg1[%c2, %c0_17, %c0_18] : memref<3x16x24xbf16, #tpu.memory_space<vmem>>, vector<1x16x24xbf16>
    %19 = vector.shape_cast %18 : vector<1x16x24xbf16> to vector<16x24xbf16>
    %cst_19 = arith.constant dense<0.000000e+00> : vector<16x24xf32>
    %20 = tpu.matmul %0, %19, %cst_19 {dimension_numbers = #tpu.dot_dimension_numbers<[1], [0], [0], [1], [0, 0, 1, 1], [], []>} : vector<16x16xbf16>, vector<16x24xbf16>, vector<16x24xf32> -> vector<16x24xf32>
    %21 = arith.truncf %20 : vector<16x24xf32> to vector<16x24xbf16>
    %cst_20 = arith.constant dense<0.000000e+00> : vector<16x128xf32>
    %22 = tpu.matmul %21, %1, %cst_20 {dimension_numbers = #tpu.dot_dimension_numbers<[1], [0], [0], [1], [0, 0, 1, 1], [], []>} : vector<16x24xbf16>, vector<24x128xbf16>, vector<16x128xf32> -> vector<16x128xf32>
    %c2_21 = arith.constant 2 : index
    %c0_22 = arith.constant 0 : index
    %c0_23 = arith.constant 0 : index
    %23 = vector.load %arg4[%c2_21, %c0_22, %c0_23] : memref<3x16x128xf32, #tpu.memory_space<vmem>>, vector<1x16x128xf32>
    %24 = vector.shape_cast %23 : vector<1x16x128xf32> to vector<16x128xf32>
    %25 = vector.shape_cast %22 : vector<16x128xf32> to vector<1x16x128xf32>
    tpu.vector_store %arg4[%c2_21, %c0_22, %c0_23], %25 {strides = array<i32>} : memref<3x16x128xf32, #tpu.memory_space<vmem>>, vector<1x16x128xf32>,
    return
  }
  func.func @transform_0(%arg0: i32) -> (i32, i32, i32) {
    %c0_i32 = arith.constant 0 : i32
    %c0_i32_0 = arith.constant 0 : i32
    %c0_i32_1 = arith.constant 0 : i32
    %c0_i32_2 = arith.constant 0 : i32
    return %c0_i32, %c0_i32_0, %c0_i32_1 : i32, i32, i32
  }
  func.func @transform_1(%arg0: i32) -> (i32, i32) {
    %c0_i32 = arith.constant 0 : i32
    %c0_i32_0 = arith.constant 0 : i32
    return %arg0, %c0_i32 : i32, i32
  }
  func.func @transform_2(%arg0: i32) -> (i32, i32) {
    %c0_i32 = arith.constant 0 : i32
    %c0_i32_0 = arith.constant 0 : i32
    %c0_i32_1 = arith.constant 0 : i32
    return %c0_i32, %c0_i32_0 : i32, i32
  }
  func.func @transform_3(%arg0: i32) -> (i32, i32, i32) {
    %c0_i32 = arith.constant 0 : i32
    %c0_i32_0 = arith.constant 0 : i32
    %c0_i32_1 = arith.constant 0 : i32
    return %c0_i32, %arg0, %c0_i32_0 : i32, i32, i32
  }
}

</mosaic_0001>

<llo_original>
// kernel: tpu_custom_call.1
$region0: #{tpu_custom_call.1}
  #allocation0 [shape = 'u32[]', space=smem, size = 0x4, offset = 0x4, fixed_abs, tag = 'smem constant byte address 0x4 - core index']
  #allocation1 [shape = 'u32[144,128]{1,0:T(1,128)}', space=vmem, size = 0x12000, scoped, tag = 'internal scratch']
  %s0 = inlined_call_operand.hbm [shape: bf16[3,16,24], index: 0, kind: input, shape index: {}]
  %s1 = inlined_call_operand.hbm [shape: bf16[16,16], index: 1, kind: input, shape index: {}]
  %s2 = inlined_call_operand.hbm [shape: bf16[24,128], index: 2, kind: input, shape index: {}]
  %s3 = inlined_call_operand.hbm [shape: f32[3,16,128], index: 3, kind: output, shape index: {}]
  %s4 = sld [smem:[#allocation0]]
  $region34: #{tpu_custom_call.1} parent=0
    _
  %s6 = ssub.s32 1, %s4
  %s7 = scalar_select 0, %s6, %s4
  $region1: #{tpu_custom_call.1} parent=0
    #allocation2 [shape = 'u8[12288]{0}', space=vmem, size = 0x3000, scoped, tag = 'input window, operand 0, single buffered']
    #allocation3 [shape = 's32[1]{0}', space=sflag, size = 0x4, scoped, tag = 'scoped memory for tpu_custom_call.1']
    #allocation4 [shape = 's32[1]{0}', space=sflag, size = 0x4, scoped, tag = 'scoped memory for tpu_custom_call.1']
    #allocation5 [shape = 'u8[4096]{0}', space=vmem, size = 0x1000, scoped, tag = 'input window, operand 1, single buffered']
    #allocation6 [shape = 's32[1]{0}', space=sflag, size = 0x4, scoped, tag = 'scoped memory for tpu_custom_call.1']
    #allocation7 [shape = 'u8[6144]{0}', space=vmem, size = 0x1800, scoped, tag = 'input window, operand 2, single buffered']
    #allocation8 [shape = 'u8[24576]{0}', space=vmem, size = 0x6000, scoped, tag = 'output window, operand 0, single buffered']
    %8 = vsyncpa [#allocation3], 0
    %9 = vsyncpa [#allocation6], 0
    %10 = vsyncpa [#allocation4], 0
    // Predicated region
    $region2: #{tpu_custom_call.1} parent=1 // pred_check
      _
    $region3: #{tpu_custom_call.1} parent=1 // pred_check_branch
      %12 = sbr.rel (0) target = $region5
    $region4: #{tpu_custom_call.1} parent=1 // pred_region
      %s14 = ssub.s32 384, 384
      %15 = vsyncadd [#allocation3], %s14
      %s16 = sshll.u32 [#allocation2], 4
      %s17 = int_to_ptr.vmem [resolvable:$true] %s16
      %22 = dma.hbm_to_vmem [thread:$0]  %s0, 384, %s17, [#allocation3], 64, 64, 4
    $region5: #{tpu_custom_call.1} parent=1 // pred_fallthru
      _
    // Predicated region
    $region6: #{tpu_custom_call.1} parent=1 // pred_check
      _
    $region7: #{tpu_custom_call.1} parent=1 // pred_check_branch
      %24 = sbr.rel (0) target = $region9
    $region8: #{tpu_custom_call.1} parent=1 // pred_region
      %s26 = ssub.s32 128, 128
      %27 = vsyncadd [#allocation6], %s26
      %s28 = sshll.u32 [#allocation5], 4
      %s29 = int_to_ptr.vmem [resolvable:$true] %s28
      %34 = dma.hbm_to_vmem [thread:$0]  %s1, 128, %s29, [#allocation6], 64, 64, 4
    $region9: #{tpu_custom_call.1} parent=1 // pred_fallthru
      _
    // Predicated region
    $region10: #{tpu_custom_call.1} parent=1 // pred_check
      _
    $region11: #{tpu_custom_call.1} parent=1 // pred_check_branch
      %36 = sbr.rel (0) target = $region13
    $region12: #{tpu_custom_call.1} parent=1 // pred_region
      %s38 = ssub.s32 192, 192
      %39 = vsyncadd [#allocation6], %s38
      %s40 = sshll.u32 [#allocation7], 4
      %s41 = int_to_ptr.vmem [resolvable:$true] %s40
      %46 = dma.hbm_to_vmem [thread:$0]  %s2, 192, %s41, [#allocation6], 64, 64, 4
    $region13: #{tpu_custom_call.1} parent=1 // pred_fallthru
      _
    // Predicated region
    $region14: #{tpu_custom_call.1} parent=1 // pred_check
      _
    $region15: #{tpu_custom_call.1} parent=1 // pred_check_branch
      %48 = sbr.rel (0) target = $region17
    $region16: #{tpu_custom_call.1} parent=1 // pred_region
      %49 = dma.done [#allocation3], 384
    $region17: #{tpu_custom_call.1} parent=1 // pred_fallthru
      _
    // Predicated region
    $region18: #{tpu_custom_call.1} parent=1 // pred_check
      _
    $region19: #{tpu_custom_call.1} parent=1 // pred_check_branch
      %51 = sbr.rel (0) target = $region21
    $region20: #{tpu_custom_call.1} parent=1 // pred_region
      %52 = dma.done [#allocation6], 128
    $region21: #{tpu_custom_call.1} parent=1 // pred_fallthru
      _
    // Predicated region
    $region22: #{tpu_custom_call.1} parent=1 // pred_check
      _
    $region23: #{tpu_custom_call.1} parent=1 // pred_check_branch
      %54 = sbr.rel (0) target = $region25
    $region24: #{tpu_custom_call.1} parent=1 // pred_region
      %55 = dma.done [#allocation6], 192
    $region25: #{tpu_custom_call.1} parent=1 // pred_fallthru
      _
    %v57 = vld [vmem:[#allocation5] sm:$0xf]
    %v58 = vld [vmem:[#allocation5 + $0x4] sm:$0xf]
    %v59 = vld [vmem:[#allocation7] sm:$0xf]
    %v60 = vld [vmem:[#allocation7 + $0x4] sm:$0xf]
    %v61 = vld [vmem:[#allocation7 + $0x8] sm:$0xf]
    %v62 = vld [vmem:[#allocation2] sm:$0xf]
    %v63 = vld [vmem:[#allocation2 + $0x4] sm:$0xf]
    %v66 = vunpack.c.l.b16 %v57
    %v67 = vunpack.c.l.b16 %v58
    %v68 = vpack.c.b16 %v67, %v66
    %v71 = vunpack.c.l.b16 %v62
    %v72 = vunpack.c.l.b16 %v63
    %v73 = vpack.c.b16 %v72, %v71
    %vm75 = vcmask 130048
    %v77 = vsel %vm75, %v68, 0
    %79 = vmatprep.subr.bf16.mxu0 0
    %80 = vmatpush1.bf16.msra.mxu0 0
    %81 = vmatprep.subr.bf16.mxu0 0
    %82 = vmatpush1.bf16.msra.mxu0 0
    %83 = vmatprep.subr.bf16.mxu0 0
    %84 = vmatpush1.bf16.msra.mxu0 0
    %85 = vmatprep.subr.bf16.mxu0 0
    %86 = vmatpush1.bf16.msra.mxu0 0
    %87 = vmatprep.subr.bf16.mxu0 0
    %88 = vmatpush1.bf16.msra.mxu0 0
    %89 = vmatprep.subr.bf16.mxu0 0
    %90 = vmatpush1.bf16.msra.mxu0 0
    %91 = vmatprep.subr.bf16.mxu0 0
    %92 = vmatpush1.bf16.msra.mxu0 0
    %93 = vmatprep.subr.bf16.mxu0 0
    %94 = vmatpush1.bf16.msra.mxu0 %v73
    %95 = vmatprep.subr.bf16.mxu0 0
    %96 = vmatpush2.bf16.msra.mxu0 0
    %97 = vmatprep.subr.bf16.mxu0 0
    %98 = vmatpush2.bf16.msra.mxu0 0
    %99 = vmatprep.subr.bf16.mxu0 0
    %100 = vmatpush2.bf16.msra.mxu0 0
    %101 = vmatprep.subr.bf16.mxu0 0
    %102 = vmatpush2.bf16.msra.mxu0 0
    %103 = vmatprep.subr.bf16.mxu0 0
    %104 = vmatpush2.bf16.msra.mxu0 0
    %105 = vmatprep.subr.bf16.mxu0 0
    %106 = vmatpush2.bf16.msra.mxu0 0
    %107 = vmatprep.subr.bf16.mxu0 0
    %108 = vmatpush2.bf16.msra.mxu0 0
    %109 = vmatprep.subr.bf16.mxu0 0
    %110 = vmatpush2.bf16.msra.mxu0 0
    %111 = vmatprep.mubr.bf16.mxu0 0
    %112 = vmatmul.mubr.bf16.gmra.mxu0 %v77
    %v113 = vpop.f32.mrf.mxu0
    %v114 = vadd.f32 0.0, %v113
    %v115 = vpop.f32.mrf.mxu0
    %v116 = vpop.f32.mrf.mxu0
    %v117 = vadd.f32 0.0, %v116
    %v118 = vpop.f32.mrf.mxu0
    %119 = vdwg.mxu0
    %v120 = vpack.c.bf16 %v117, %v114
    %v124 = vunpack.c.l.b16 %v59
    %v125 = vunpack.c.l.b16 %v60
    %v126 = vunpack.c.l.b16 %v61
    %v127 = vpack.c.b16 %v125, %v124
    %v128 = vpack.c.b16 %v126, %v126
    %vm130 = vcmask 195584
    %v132 = vsel %vm130, %v120, 0
    %vm134 = vcmask 1043456
    %v136 = vsel %vm134, %v128, 0
    %138 = vmatprep.subr.bf16.mxu0 0
    %139 = vmatpush1.bf16.msra.mxu0 0
    %140 = vmatprep.subr.bf16.mxu0 0
    %141 = vmatpush1.bf16.msra.mxu0 0
    %142 = vmatprep.subr.bf16.mxu0 0
    %143 = vmatpush1.bf16.msra.mxu0 0
    %144 = vmatprep.subr.bf16.mxu0 0
    %145 = vmatpush1.bf16.msra.mxu0 0
    %146 = vmatprep.subr.bf16.mxu0 0
    %147 = vmatpush1.bf16.msra.mxu0 0
    %148 = vmatprep.subr.bf16.mxu0 0
    %149 = vmatpush1.bf16.msra.mxu0 0
    %150 = vmatprep.subr.bf16.mxu0 0
    %151 = vmatpush1.bf16.msra.mxu0 %v136
    %152 = vmatprep.subr.bf16.mxu0 0
    %153 = vmatpush1.bf16.msra.mxu0 %v127
    %154 = vmatprep.subr.bf16.mxu0 0
    %155 = vmatpush2.bf16.msra.mxu0 0
    %156 = vmatprep.subr.bf16.mxu0 0
    %157 = vmatpush2.bf16.msra.mxu0 0
    %158 = vmatprep.subr.bf16.mxu0 0
    %159 = vmatpush2.bf16.msra.mxu0 0
    %160 = vmatprep.subr.bf16.mxu0 0
    %161 = vmatpush2.bf16.msra.mxu0 0
    %162 = vmatprep.subr.bf16.mxu0 0
    %163 = vmatpush2.bf16.msra.mxu0 0
    %164 = vmatprep.subr.bf16.mxu0 0
    %165 = vmatpush2.bf16.msra.mxu0 0
    %166 = vmatprep.subr.bf16.mxu0 0
    %167 = vmatpush2.bf16.msra.mxu0 0
    %168 = vmatprep.subr.bf16.mxu0 0
    %169 = vmatpush2.bf16.msra.mxu0 0
    %170 = vmatprep.mubr.bf16.mxu0 0
    %171 = vmatmul.mubr.bf16.gmra.mxu0 %v132
    %v172 = vpop.f32.mrf.mxu0
    %v173 = vadd.f32 0.0, %v172
    %v174 = vpop.f32.mrf.mxu0
    %v175 = vpop.f32.mrf.mxu0
    %v176 = vadd.f32 0.0, %v175
    %v177 = vpop.f32.mrf.mxu0
    %178 = vdwg.mxu0
    %179 = vst [vmem:[#allocation8] sm:$0xff] %v173
    %180 = vst [vmem:[#allocation8 + $0x8] sm:$0xff] %v176
    %s181 = scalar_lea.vmem [#allocation2], 8
    %v182 = vld [vmem:[%s181] sm:$0xf]
    %v183 = vld [vmem:[%s181 + $0x4] sm:$0xf]
    %v186 = vunpack.c.l.b16 %v182
    %v187 = vunpack.c.l.b16 %v183
    %v188 = vpack.c.b16 %v187, %v186
    %190 = vmatprep.subr.bf16.mxu0 0
    %191 = vmatpush1.bf16.msra.mxu0 0
    %192 = vmatprep.subr.bf16.mxu0 0
    %193 = vmatpush1.bf16.msra.mxu0 0
    %194 = vmatprep.subr.bf16.mxu0 0
    %195 = vmatpush1.bf16.msra.mxu0 0
    %196 = vmatprep.subr.bf16.mxu0 0
    %197 = vmatpush1.bf16.msra.mxu0 0
    %198 = vmatprep.subr.bf16.mxu0 0
    %199 = vmatpush1.bf16.msra.mxu0 0
    %200 = vmatprep.subr.bf16.mxu0 0
    %201 = vmatpush1.bf16.msra.mxu0 0
    %202 = vmatprep.subr.bf16.mxu0 0
    %203 = vmatpush1.bf16.msra.mxu0 0
    %204 = vmatprep.subr.bf16.mxu0 0
    %205 = vmatpush1.bf16.msra.mxu0 %v188
    %206 = vmatprep.subr.bf16.mxu0 0
    %207 = vmatpush2.bf16.msra.mxu0 0
    %208 = vmatprep.subr.bf16.mxu0 0
    %209 = vmatpush2.bf16.msra.mxu0 0
    %210 = vmatprep.subr.bf16.mxu0 0
    %211 = vmatpush2.bf16.msra.mxu0 0
    %212 = vmatprep.subr.bf16.mxu0 0
    %213 = vmatpush2.bf16.msra.mxu0 0
    %214 = vmatprep.subr.bf16.mxu0 0
    %215 = vmatpush2.bf16.msra.mxu0 0
    %216 = vmatprep.subr.bf16.mxu0 0
    %217 = vmatpush2.bf16.msra.mxu0 0
    %218 = vmatprep.subr.bf16.mxu0 0
    %219 = vmatpush2.bf16.msra.mxu0 0
    %220 = vmatprep.subr.bf16.mxu0 0
    %221 = vmatpush2.bf16.msra.mxu0 0
    %222 = vmatprep.mubr.bf16.mxu0 0
    %223 = vmatmul.mubr.bf16.gmra.mxu0 %v77
    %v224 = vpop.f32.mrf.mxu0
    %v225 = vadd.f32 0.0, %v224
    %v226 = vpop.f32.mrf.mxu0
    %v227 = vpop.f32.mrf.mxu0
    %v228 = vadd.f32 0.0, %v227
    %v229 = vpop.f32.mrf.mxu0
    %230 = vdwg.mxu0
    %v231 = vpack.c.bf16 %v228, %v225
    %v233 = vsel %vm130, %v231, 0
    %235 = vmatprep.subr.bf16.mxu0 0
    %236 = vmatpush1.bf16.msra.mxu0 0
    %237 = vmatprep.subr.bf16.mxu0 0
    %238 = vmatpush1.bf16.msra.mxu0 0
    %239 = vmatprep.subr.bf16.mxu0 0
    %240 = vmatpush1.bf16.msra.mxu0 0
    %241 = vmatprep.subr.bf16.mxu0 0
    %242 = vmatpush1.bf16.msra.mxu0 0
    %243 = vmatprep.subr.bf16.mxu0 0
    %244 = vmatpush1.bf16.msra.mxu0 0
    %245 = vmatprep.subr.bf16.mxu0 0
    %246 = vmatpush1.bf16.msra.mxu0 0
    %247 = vmatprep.subr.bf16.mxu0 0
    %248 = vmatpush1.bf16.msra.mxu0 %v136
    %249 = vmatprep.subr.bf16.mxu0 0
    %250 = vmatpush1.bf16.msra.mxu0 %v127
    %251 = vmatprep.subr.bf16.mxu0 0
    %252 = vmatpush2.bf16.msra.mxu0 0
    %253 = vmatprep.subr.bf16.mxu0 0
    %254 = vmatpush2.bf16.msra.mxu0 0
    %255 = vmatprep.subr.bf16.mxu0 0
    %256 = vmatpush2.bf16.msra.mxu0 0
    %257 = vmatprep.subr.bf16.mxu0 0
    %258 = vmatpush2.bf16.msra.mxu0 0
    %259 = vmatprep.subr.bf16.mxu0 0
    %260 = vmatpush2.bf16.msra.mxu0 0
    %261 = vmatprep.subr.bf16.mxu0 0
    %262 = vmatpush2.bf16.msra.mxu0 0
    %263 = vmatprep.subr.bf16.mxu0 0
    %264 = vmatpush2.bf16.msra.mxu0 0
    %265 = vmatprep.subr.bf16.mxu0 0
    %266 = vmatpush2.bf16.msra.mxu0 0
    %267 = vmatprep.mubr.bf16.mxu0 0
    %268 = vmatmul.mubr.bf16.gmra.mxu0 %v233
    %v269 = vpop.f32.mrf.mxu0
    %v270 = vadd.f32 0.0, %v269
    %v271 = vpop.f32.mrf.mxu0
    %v272 = vpop.f32.mrf.mxu0
    %v273 = vadd.f32 0.0, %v272
    %v274 = vpop.f32.mrf.mxu0
    %275 = vdwg.mxu0
    %s276 = scalar_lea.vmem [#allocation8], 16
    %277 = vst [vmem:[%s276] sm:$0xff] %v270
    %278 = vst [vmem:[%s276 + $0x8] sm:$0xff] %v273
    %s279 = scalar_lea.vmem [#allocation2], 16
    %v280 = vld [vmem:[%s279] sm:$0xf]
    %v281 = vld [vmem:[%s279 + $0x4] sm:$0xf]
    %v284 = vunpack.c.l.b16 %v280
    %v285 = vunpack.c.l.b16 %v281
    %v286 = vpack.c.b16 %v285, %v284
    %288 = vmatprep.subr.bf16.mxu0 0
    %289 = vmatpush1.bf16.msra.mxu0 0
    %290 = vmatprep.subr.bf16.mxu0 0
    %291 = vmatpush1.bf16.msra.mxu0 0
    %292 = vmatprep.subr.bf16.mxu0 0
    %293 = vmatpush1.bf16.msra.mxu0 0
    %294 = vmatprep.subr.bf16.mxu0 0
    %295 = vmatpush1.bf16.msra.mxu0 0
    %296 = vmatprep.subr.bf16.mxu0 0
    %297 = vmatpush1.bf16.msra.mxu0 0
    %298 = vmatprep.subr.bf16.mxu0 0
    %299 = vmatpush1.bf16.msra.mxu0 0
    %300 = vmatprep.subr.bf16.mxu0 0
    %301 = vmatpush1.bf16.msra.mxu0 0
    %302 = vmatprep.subr.bf16.mxu0 0
    %303 = vmatpush1.bf16.msra.mxu0 %v286
    %304 = vmatprep.subr.bf16.mxu0 0
    %305 = vmatpush2.bf16.msra.mxu0 0
    %306 = vmatprep.subr.bf16.mxu0 0
    %307 = vmatpush2.bf16.msra.mxu0 0
    %308 = vmatprep.subr.bf16.mxu0 0
    %309 = vmatpush2.bf16.msra.mxu0 0
    %310 = vmatprep.subr.bf16.mxu0 0
    %311 = vmatpush2.bf16.msra.mxu0 0
    %312 = vmatprep.subr.bf16.mxu0 0
    %313 = vmatpush2.bf16.msra.mxu0 0
    %314 = vmatprep.subr.bf16.mxu0 0
    %315 = vmatpush2.bf16.msra.mxu0 0
    %316 = vmatprep.subr.bf16.mxu0 0
    %317 = vmatpush2.bf16.msra.mxu0 0
    %318 = vmatprep.subr.bf16.mxu0 0
    %319 = vmatpush2.bf16.msra.mxu0 0
    %320 = vmatprep.mubr.bf16.mxu0 0
    %321 = vmatmul.mubr.bf16.gmra.mxu0 %v77
    %v322 = vpop.f32.mrf.mxu0
    %v323 = vadd.f32 0.0, %v322
    %v324 = vpop.f32.mrf.mxu0
    %v325 = vpop.f32.mrf.mxu0
    %v326 = vadd.f32 0.0, %v325
    %v327 = vpop.f32.mrf.mxu0
    %328 = vdwg.mxu0
    %v329 = vpack.c.bf16 %v326, %v323
    %v331 = vsel %vm130, %v329, 0
    %333 = vmatprep.subr.bf16.mxu0 0
    %334 = vmatpush1.bf16.msra.mxu0 0
    %335 = vmatprep.subr.bf16.mxu0 0
    %336 = vmatpush1.bf16.msra.mxu0 0
    %337 = vmatprep.subr.bf16.mxu0 0
    %338 = vmatpush1.bf16.msra.mxu0 0
    %339 = vmatprep.subr.bf16.mxu0 0
    %340 = vmatpush1.bf16.msra.mxu0 0
    %341 = vmatprep.subr.bf16.mxu0 0
    %342 = vmatpush1.bf16.msra.mxu0 0
    %343 = vmatprep.subr.bf16.mxu0 0
    %344 = vmatpush1.bf16.msra.mxu0 0
    %345 = vmatprep.subr.bf16.mxu0 0
    %346 = vmatpush1.bf16.msra.mxu0 %v136
    %347 = vmatprep.subr.bf16.mxu0 0
    %348 = vmatpush1.bf16.msra.mxu0 %v127
    %349 = vmatprep.subr.bf16.mxu0 0
    %350 = vmatpush2.bf16.msra.mxu0 0
    %351 = vmatprep.subr.bf16.mxu0 0
    %352 = vmatpush2.bf16.msra.mxu0 0
    %353 = vmatprep.subr.bf16.mxu0 0
    %354 = vmatpush2.bf16.msra.mxu0 0
    %355 = vmatprep.subr.bf16.mxu0 0
    %356 = vmatpush2.bf16.msra.mxu0 0
    %357 = vmatprep.subr.bf16.mxu0 0
    %358 = vmatpush2.bf16.msra.mxu0 0
    %359 = vmatprep.subr.bf16.mxu0 0
    %360 = vmatpush2.bf16.msra.mxu0 0
    %361 = vmatprep.subr.bf16.mxu0 0
    %362 = vmatpush2.bf16.msra.mxu0 0
    %363 = vmatprep.subr.bf16.mxu0 0
    %364 = vmatpush2.bf16.msra.mxu0 0
    %365 = vmatprep.mubr.bf16.mxu0 0
    %366 = vmatmul.mubr.bf16.gmra.mxu0 %v331
    %v367 = vpop.f32.mrf.mxu0
    %v368 = vadd.f32 0.0, %v367
    %v369 = vpop.f32.mrf.mxu0
    %v370 = vpop.f32.mrf.mxu0
    %v371 = vadd.f32 0.0, %v370
    %v372 = vpop.f32.mrf.mxu0
    %373 = vdwg.mxu0
    %s374 = scalar_lea.vmem [#allocation8], 32
    %375 = vst [vmem:[%s374] sm:$0xff] %v368
    %376 = vst [vmem:[%s374 + $0x8] sm:$0xff] %v371
    // Predicated region
    $region26: #{tpu_custom_call.1} parent=1 // pred_check
      _
    $region27: #{tpu_custom_call.1} parent=1 // pred_check_branch
      %378 = sbr.rel (0) target = $region29
    $region28: #{tpu_custom_call.1} parent=1 // pred_region
      %s380 = ssub.s32 768, 768
      %381 = vsyncadd [#allocation4], %s380
      %s382 = sshll.u32 [#allocation8], 4
      %s383 = int_to_ptr.vmem [resolvable:$true] %s382
      %388 = dma.vmem_to_hbm [thread:$0]  %s383, 768, %s3, [#allocation4], 128, 128, 8
    $region29: #{tpu_custom_call.1} parent=1 // pred_fallthru
      _
    // Predicated region
    $region30: #{tpu_custom_call.1} parent=1 // pred_check
      _
    $region31: #{tpu_custom_call.1} parent=1 // pred_check_branch
      %390 = sbr.rel (0) target = $region33
    $region32: #{tpu_custom_call.1} parent=1 // pred_region
      %391 = dma.done [#allocation4], 768
    $region33: #{tpu_custom_call.1} parent=1 // pred_fallthru
      _
    %392 = vsyncpa [#allocation3], 1
    %393 = vsyncpa [#allocation6], 1
    %394 = vsyncpa [#allocation4], 1

</llo_original>
